<compile_context>
chip_gen: v7x
topology: tpu7x:2x2x1
jax: 0.10.0
libtpu: 0.0.40
codegen_flags: <defaults>
</compile_context>

<pallas_src>
from functools import partial

import jax
import jax.numpy as jnp
from jax import lax
from jax.experimental import pallas as pl
from jax.experimental.pallas import tpu as pltpu

NEW_SIZE = 80                    # in_features
OUT_FEATURES = NEW_SIZE + 10     # 90
N_REGIONS = 77
LEAKY_SLOPE = 0.2


def similarity_kernel(region_ref, x_ref, c1_ref, c2_ref, e_ref):
    """Fused edge-score kernel.

    region_ref : SMEM (1,) int32   index of the target region
    x_ref      : VMEM [77, 80]     chicago region representations
    c1_ref     : VMEM [1, 80]      folded source attention vector (a1 @ W1)
    c2_ref     : VMEM [1, 80]      folded target attention vector (a2 @ W1)
    e_ref      : VMEM [1, 77]      lane-dense attention scores
    """
    r = region_ref[0]
    x_target = x_ref[pl.ds(r, 1), :]                      # [1, 80] dynamic row

    # s_src = chicago[region] . c1  -> [1, 1]   (contract feature dim of both)
    s_src = lax.dot_general(
        c1_ref[...], x_target,
        dimension_numbers=(((1,), (1,)), ((), ())),
        preferred_element_type=jnp.float32)

    # s_tgt = chicago @ c2 laid out lane-dense -> [1, 77]
    s_tgt = lax.dot_general(
        c2_ref[...], x_ref[...],
        dimension_numbers=(((1,), (1,)), ((), ())),
        preferred_element_type=jnp.float32)

    e = s_src + s_tgt                                     # broadcast [1,1]+[1,77]
    e_ref[...] = jnp.where(e >= 0.0, e, LEAKY_SLOPE * e)  # LeakyReLU(0.2) on VPU


@jax.jit
def similarity_forward(chicago_region_representations, region, w_linear, w_attn):
    """chicago_region_representations: [77, 80]
       region:   scalar int (traced -> no recompile per region)
       w_linear: [90, 80]   (nn.Linear(80, 90, bias=False).weight)
       w_attn:   [1, 180]   (nn.Linear(180, 1, bias=False).weight)
       returns:  [77, 1] float32
    """
    chicago = chicago_region_representations.astype(jnp.float32)
    w_linear = w_linear.astype(jnp.float32)
    w_attn = w_attn.astype(jnp.float32)

    # Fold attention vectors into the linear weight (constant-folds under jit
    # when the weights are static); each is a [1, 80] row vector.
    c1 = w_attn[:, :OUT_FEATURES] @ w_linear              # [1, 80]
    c2 = w_attn[:, OUT_FEATURES:] @ w_linear              # [1, 80]

    region_arr = jnp.asarray(region, jnp.int32).reshape((1,))

    smem = pl.BlockSpec(memory_space=pltpu.MemorySpace.SMEM)
    vmem = pl.BlockSpec(memory_space=pltpu.MemorySpace.VMEM)

    e_row = pl.pallas_call(
        similarity_kernel,
        out_shape=jax.ShapeDtypeStruct((1, N_REGIONS), jnp.float32),
        in_specs=[smem, vmem, vmem, vmem],
        out_specs=vmem,
    )(region_arr, chicago, c1, c2)                        # [1, 77] lane-dense

    return e_row.reshape(N_REGIONS, 1)                    # module's [77, 1]


if __name__ == "__main__":
    key = jax.random.PRNGKey(0)
    k_x, k_w1, k_wa = jax.random.split(key, 3)

    # Deterministic synthetic parameters (shapes from the module's __init__).
    # nn.Linear(80, 90, bias=False).weight  -> [90, 80]
    bound1 = 1.0 / (NEW_SIZE ** 0.5)
    w_linear = jax.random.uniform(
        k_w1, (OUT_FEATURES, NEW_SIZE), jnp.float32, minval=-bound1, maxval=bound1)
    # nn.Linear(180, 1, bias=False).weight  -> [1, 180]
    bound2 = 1.0 / ((2 * OUT_FEATURES) ** 0.5)
    w_attn = jax.random.uniform(
        k_wa, (1, 2 * OUT_FEATURES), jnp.float32, minval=-bound2, maxval=bound2)

    # Input: 77 region representations of size 80.
    chicago = jax.random.normal(k_x, (N_REGIONS, NEW_SIZE), jnp.float32)
    region = 5

    out = similarity_forward(chicago, region, w_linear, w_attn)
    out = jax.block_until_ready(out)
    assert out.shape == (N_REGIONS, 1) and out.dtype == jnp.float32

    # Pure-JAX reference of the original (un-folded) math.
    h_ref = jnp.concatenate([chicago[region][None, :], chicago], 0) @ w_linear.T
    a_in = jnp.concatenate(
        [jnp.broadcast_to(h_ref[0:1], (N_REGIONS, OUT_FEATURES)), h_ref[1:]], axis=1)
    e_ref = a_in @ w_attn.T
    e_ref = jnp.where(e_ref >= 0.0, e_ref, LEAKY_SLOPE * e_ref)
    assert jnp.allclose(out, e_ref, atol=1e-4, rtol=1e-4)

    # Also check a second region reuses the same compiled kernel (traced scalar).
    out2 = jax.block_until_ready(similarity_forward(chicago, 42, w_linear, w_attn))
    h_ref2 = jnp.concatenate([chicago[42][None, :], chicago], 0) @ w_linear.T
    a_in2 = jnp.concatenate(
        [jnp.broadcast_to(h_ref2[0:1], (N_REGIONS, OUT_FEATURES)), h_ref2[1:]], axis=1)
    e_ref2 = a_in2 @ w_attn.T
    e_ref2 = jnp.where(e_ref2 >= 0.0, e_ref2, LEAKY_SLOPE * e_ref2)
    assert jnp.allclose(out2, e_ref2, atol=1e-4, rtol=1e-4)

    print("KERNEL_OK")
</pallas_src>

<mosaic_0001>
module attributes {stable_mosaic.version = 11 : i64} {
  func.func @similarity_kernel(%arg0: memref<1xi32, #tpu.memory_space<smem>>, %arg1: memref<77x80xf32, #tpu.memory_space<vmem>>, %arg2: memref<1x80xf32, #tpu.memory_space<vmem>>, %arg3: memref<1x80xf32, #tpu.memory_space<vmem>>, %arg4: memref<1x77xf32, #tpu.memory_space<vmem>>) attributes {dimension_semantics = [], scalar_prefetch = 0 : i64, scratch_operands = 0 : i64, tpu.core_type = #tpu.core_type<tc>} {
    %c0 = arith.constant 0 : index
    %0 = memref.load %arg0[%c0] : memref<1xi32, #tpu.memory_space<smem>>
    %1 = arith.index_cast %0 : i32 to index
    %c0_0 = arith.constant 0 : index
    %2 = vector.load %arg1[%1, %c0_0] : memref<77x80xf32, #tpu.memory_space<vmem>>, vector<1x80xf32>
    %c0_1 = arith.constant 0 : index
    %c0_2 = arith.constant 0 : index
    %3 = vector.load %arg2[%c0_1, %c0_2] : memref<1x80xf32, #tpu.memory_space<vmem>>, vector<1x80xf32>
    %cst = arith.constant dense<0.000000e+00> : vector<1x1xf32>
    %4 = tpu.matmul %3, %2, %cst {dimension_numbers = #tpu.dot_dimension_numbers<[1], [1], [0], [0], [0, 0, 1, 0], [], []>} : vector<1x80xf32>, vector<1x80xf32>, vector<1x1xf32> -> vector<1x1xf32>
    %c0_3 = arith.constant 0 : index
    %c0_4 = arith.constant 0 : index
    %5 = vector.load %arg3[%c0_3, %c0_4] : memref<1x80xf32, #tpu.memory_space<vmem>>, vector<1x80xf32>
    %c0_5 = arith.constant 0 : index
    %c0_6 = arith.constant 0 : index
    %6 = vector.load %arg1[%c0_5, %c0_6] : memref<77x80xf32, #tpu.memory_space<vmem>>, vector<77x80xf32>
    %cst_7 = arith.constant dense<0.000000e+00> : vector<1x77xf32>
    %7 = tpu.matmul %5, %6, %cst_7 {dimension_numbers = #tpu.dot_dimension_numbers<[1], [1], [0], [0], [0, 0, 1, 0], [], []>} : vector<1x80xf32>, vector<77x80xf32>, vector<1x77xf32> -> vector<1x77xf32>
    %8 = vector.broadcast %4 : vector<1x1xf32> to vector<1x77xf32>
    %9 = arith.addf %8, %7 : vector<1x77xf32>
    %cst_8 = arith.constant 0.000000e+00 : f32
    %10 = vector.broadcast %cst_8 : f32 to vector<1x77xf32>
    %11 = arith.cmpf oge, %9, %10 : vector<1x77xf32>
    %cst_9 = arith.constant 2.000000e-01 : f32
    %12 = vector.broadcast %cst_9 : f32 to vector<1x77xf32>
    %13 = arith.mulf %12, %9 : vector<1x77xf32>
    %14 = arith.select %11, %9, %13 : vector<1x77xi1>, vector<1x77xf32>
    %c0_10 = arith.constant 0 : index
    %c0_11 = arith.constant 0 : index
    %15 = vector.load %arg4[%c0_10, %c0_11] : memref<1x77xf32, #tpu.memory_space<vmem>>, vector<1x77xf32>
    tpu.vector_store %arg4[%c0_10, %c0_11], %14 {strides = array<i32>} : memref<1x77xf32, #tpu.memory_space<vmem>>, vector<1x77xf32>,
    return
  }
}

</mosaic_0001>

<llo_original>
// kernel: similarity_forward.1
$region0: #{similarity_forward.1}
  #allocation0 [shape = 'u32[]', space=smem, size = 0x4, offset = 0x4, fixed_abs, tag = 'smem constant byte address 0x4 - core index']
  #allocation1 [shape = 'u32[144,128]{1,0:T(1,128)}', space=vmem, size = 0x12000, scoped, tag = 'internal scratch']
  #allocation2 [shape = 's32[1]{0:T(128)S(6)}', space=smem, size = 0x200, scoped, tag = 'scoped memory for similarity_forward.1']
  %s0 = inlined_call_operand.<no memory space> [shape: s32[1], index: 0, kind: input, shape index: {}]
  %s1 = inlined_call_operand.vmem [shape: f32[77,80], index: 1, kind: input, shape index: {}]
  %s2 = inlined_call_operand.vmem [shape: f32[1,80], index: 2, kind: input, shape index: {}]
  %s3 = inlined_call_operand.vmem [shape: f32[1,80], index: 3, kind: input, shape index: {}]
  %s4 = inlined_call_operand.hbm [shape: f32[1,77], index: 4, kind: output, shape index: {}]
  %s5 = sld [smem:[#allocation0]]
  $region26: #{similarity_forward.1} parent=0
    _
  %s7 = ssub.s32 1, %s5
  %s8 = scalar_select 0, %s7, %s5
  %9 = sst [smem:[#allocation2]] %s0
  $region1: #{similarity_forward.1} parent=0
    #allocation3 [shape = 'u8[512]{0}', space=vmem, size = 0x400, scoped, tag = 'output window, operand 0, single buffered']
    #allocation4 [shape = 's32[1]{0}', space=sflag, size = 0x4, scoped, tag = 'scoped memory for similarity_forward.1']
    %10 = vsyncpa [#allocation4], 0
    // Predicated region
    $region2: #{similarity_forward.1} parent=1 // pred_check
      _
    $region3: #{similarity_forward.1} parent=1 // pred_check_branch
      %12 = sbr.rel (0) target = $region5
    $region4: #{similarity_forward.1} parent=1 // pred_region
      _
    $region5: #{similarity_forward.1} parent=1 // pred_fallthru
      _
    // Predicated region
    $region6: #{similarity_forward.1} parent=1 // pred_check
      _
    $region7: #{similarity_forward.1} parent=1 // pred_check_branch
      %14 = sbr.rel (0) target = $region9
    $region8: #{similarity_forward.1} parent=1 // pred_region
      _
    $region9: #{similarity_forward.1} parent=1 // pred_fallthru
      _
    // Predicated region
    $region10: #{similarity_forward.1} parent=1 // pred_check
      _
    $region11: #{similarity_forward.1} parent=1 // pred_check_branch
      %16 = sbr.rel (0) target = $region13
    $region12: #{similarity_forward.1} parent=1 // pred_region
      _
    $region13: #{similarity_forward.1} parent=1 // pred_fallthru
      _
    // Predicated region
    $region14: #{similarity_forward.1} parent=1 // pred_check
      _
    $region15: #{similarity_forward.1} parent=1 // pred_check_branch
      %18 = sbr.rel (0) target = $region17
    $region16: #{similarity_forward.1} parent=1 // pred_region
      _
    $region17: #{similarity_forward.1} parent=1 // pred_fallthru
      _
    %s19 = sld [smem:[#allocation2]]
    %s20 = scalar_lea.vmem %s1, %s19
    %v21 = vld [vmem:[%s20] sm:$0x1]
    %v22 = vld [vmem:[%s2] sm:$0x1]
    %v23 = vmul.f32 %v22, %v21
    %vm24 = vcmask 647168
    %v25 = vsel %vm24, %v23, 0.0
    %26 = vadd.xlane.f32.xlu0 %v25
    %v27 = vpop.xlane.xlu0 %26
    %v28 = vld [vmem:[%s3] sm:$0x1]
    %v29 = vld [vmem:[%s1] sm:$0xff]
    %v30 = vld [vmem:[%s1 + $0x8] sm:$0xff]
    %v31 = vld [vmem:[%s1 + $0x10] sm:$0xff]
    %v32 = vld [vmem:[%s1 + $0x18] sm:$0xff]
    %v33 = vld [vmem:[%s1 + $0x20] sm:$0xff]
    %v34 = vld [vmem:[%s1 + $0x28] sm:$0xff]
    %v35 = vld [vmem:[%s1 + $0x30] sm:$0xff]
    %v36 = vld [vmem:[%s1 + $0x38] sm:$0xff]
    %v37 = vld [vmem:[%s1 + $0x40] sm:$0xff]
    %v38 = vld [vmem:[%s1 + $0x48] sm:$0x1f]
    %vm39 = vcmask 654336
    %v41 = vsel %vm39, %v28, 0
    %v44 = vsel %vm39, %v29, 0
    %v47 = vsel %vm39, %v30, 0
    %v50 = vsel %vm39, %v31, 0
    %v53 = vsel %vm39, %v32, 0
    %v56 = vsel %vm39, %v33, 0
    %v59 = vsel %vm39, %v34, 0
    %v62 = vsel %vm39, %v35, 0
    %v65 = vsel %vm39, %v36, 0
    %v68 = vsel %vm39, %v37, 0
    %v71 = vsel %vm39, %v38, 0
    %73 = vmatprep.subr.mxu0 0.0
    %74 = vmatpush1.xpose.msra.mxu0 %v44
    %75 = vmatprep.subr.mxu0 0.0
    %76 = vmatpush1.xpose.msra.mxu0 %v47
    %77 = vmatprep.subr.mxu0 0.0
    %78 = vmatpush1.xpose.msra.mxu0 %v50
    %79 = vmatprep.subr.mxu0 0.0
    %80 = vmatpush1.xpose.msra.mxu0 %v53
    %81 = vmatprep.subr.mxu0 0.0
    %82 = vmatpush1.xpose.msra.mxu0 %v56
    %83 = vmatprep.subr.mxu0 0.0
    %84 = vmatpush1.xpose.msra.mxu0 %v59
    %85 = vmatprep.subr.mxu0 0.0
    %86 = vmatpush1.xpose.msra.mxu0 %v62
    %87 = vmatprep.subr.mxu0 0.0
    %88 = vmatpush1.xpose.msra.mxu0 %v65
    %89 = vmatprep.subr.mxu0 0.0
    %90 = vmatpush1.xpose.msra.mxu0 %v68
    %91 = vmatprep.subr.mxu0 0.0
    %92 = vmatpush1.xpose.msra.mxu0 %v71
    %93 = vmatprep.subr.mxu0 0.0
    %94 = vmatpush1.xpose.msra.mxu0 0.0
    %95 = vmatprep.subr.mxu0 0.0
    %96 = vmatpush1.xpose.msra.mxu0 0.0
    %97 = vmatprep.subr.mxu0 0.0
    %98 = vmatpush1.xpose.msra.mxu0 0.0
    %99 = vmatprep.subr.mxu0 0.0
    %100 = vmatpush1.xpose.msra.mxu0 0.0
    %101 = vmatprep.subr.mxu0 0.0
    %102 = vmatpush1.xpose.msra.mxu0 0.0
    %103 = vmatprep.subr.mxu0 0.0
    %104 = vmatpush1.xpose.msra.mxu0 0.0
    %105 = vmatprep.subr.mxu0 0.0
    %106 = vmatpush1.xpose.msra.mxu0 0.0
    %107 = vmatprep.subr.mxu0 0.0
    %108 = vmatpush1.xpose.msra.mxu0 0.0
    %109 = vmatprep.subr.mxu0 0.0
    %110 = vmatpush1.xpose.msra.mxu0 0.0
    %111 = vmatprep.subr.mxu0 0.0
    %112 = vmatpush1.xpose.msra.mxu0 0.0
    %113 = vmatprep.subr.mxu0 0.0
    %114 = vmatpush1.xpose.msra.mxu0 0.0
    %115 = vmatprep.subr.mxu0 0.0
    %116 = vmatpush1.xpose.msra.mxu0 0.0
    %117 = vmatprep.subr.mxu0 0.0
    %118 = vmatpush1.xpose.msra.mxu0 0.0
    %119 = vmatprep.subr.mxu0 0.0
    %120 = vmatpush1.xpose.msra.mxu0 0.0
    %121 = vmatprep.subr.mxu0 0.0
    %122 = vmatpush1.xpose.msra.mxu0 0.0
    %123 = vmatprep.subr.mxu0 0.0
    %124 = vmatpush1.xpose.msra.mxu0 0.0
    %125 = vmatprep.subr.mxu0 0.0
    %126 = vmatpush1.xpose.msra.mxu0 0.0
    %127 = vmatprep.subr.mxu0 0.0
    %128 = vmatpush1.xpose.msra.mxu0 0.0
    %129 = vmatprep.subr.mxu0 0.0
    %130 = vmatpush1.xpose.msra.mxu0 0.0
    %131 = vmatprep.subr.mxu0 0.0
    %132 = vmatpush1.xpose.msra.mxu0 0.0
    %133 = vmatprep.subr.mxu0 0.0
    %134 = vmatpush1.xpose.msra.mxu0 0.0
    %135 = vmatprep.subr.mxu0 0.0
    %136 = vmatpush1.xpose.msra.mxu0 0.0
    %137 = vmatprep.mubr.f32.mxu0 0.0
    %138 = vmatmul.mubr.f32.gmra.mrb[0].mxu0 %v41
    %v139 = vpop.f32.mrb[0].mxu0
    %v140 = vadd.f32 0.0, %v139
    %v141 = vpop.f32.mrb[0].mxu0
    %142 = vdwg.mxu0
    %v143 = vadd.f32 %v27, %v140
    %vm144 = vcmp.ge.f32.partialorder %v143, 0.0
    %v145 = vmul.f32 %v143, 0.2
    %v146 = vsel %vm144, %v143, %v145
    %vm147 = vcmask 622592
    %148 = vst.msk [vmem:[#allocation3] sm:$0x1] %vm147, %v146
    // Predicated region
    $region18: #{similarity_forward.1} parent=1 // pred_check
      _
    $region19: #{similarity_forward.1} parent=1 // pred_check_branch
      %150 = sbr.rel (0) target = $region21
    $region20: #{similarity_forward.1} parent=1 // pred_region
      %s152 = ssub.s32 16, 16
      %153 = vsyncadd [#allocation4], %s152
      %s155 = sshll.u32 [#allocation3], 4
      %s156 = int_to_ptr.vmem [resolvable:$true] %s155
      %158 = dma.vmem_to_hbm [thread:$0]  %s156, 16, %s4, [#allocation4]
    $region21: #{similarity_forward.1} parent=1 // pred_fallthru
      _
    // Predicated region
    $region22: #{similarity_forward.1} parent=1 // pred_check
      _
    $region23: #{similarity_forward.1} parent=1 // pred_check_branch
      %160 = sbr.rel (0) target = $region25
    $region24: #{similarity_forward.1} parent=1 // pred_region
      %161 = dma.done [#allocation4], 16
    $region25: #{similarity_forward.1} parent=1 // pred_fallthru
      _
    %162 = vsyncpa [#allocation4], 1

</llo_original>
